<compile_context>
chip_gen: v6e
topology: v6e:2x2x1
jax: 0.10.0
libtpu: 0.0.40
codegen_flags: <defaults>
</compile_context>

<pallas_src>
import functools

import numpy as np

import jax
import jax.numpy as jnp
from jax import lax
from jax.experimental import pallas as pl
from jax.experimental.pallas import tpu as pltpu

_EPS = 1e-5  # PyTorch BatchNorm2d default


def _fused_dw_pw_kernel(x_ref, wdw_ref, b1_ref, wpw_ref, b2_ref, o_ref, *,
                        th, out_w, sh, sw):
    """Fused: depthwise 3x3 (strided) -> bias -> ReLU -> 1x1 bf16 matmul -> bias -> ReLU.

    x_ref:   (1, slab_rows//sh, sh, sw, wp//sw, C_in)  bf16 halo'd row slab of the
             zero-padded NHWC input (row/col stride phases are separate axes)
    wdw_ref: (9, C_in)        f32 depthwise taps (BN scale folded in), row = kh*3+kw
    b1_ref:  (1, C_in)        f32 folded BN bias (depthwise stage)
    wpw_ref: (C_in, C_out_p)  bf16 pointwise weight (BN scale folded, C_out lane-padded)
    b2_ref:  (1, C_out_p)     f32 folded BN bias (pointwise stage)
    o_ref:   (1, th, out_w, C_out_p) f32 output row tile
    """
    # Depthwise 3x3: padded slab row = sh*r + kh  -> (outer r + kh//sh, phase kh%sh)
    #                padded col      = sw*j + kw  -> (phase kw%sw, outer j + kw//sw)
    # All tap slices are static and dense (full lane dim = C_in).
    acc = None
    for kh in range(3):
        ro, ri = kh // sh, kh % sh
        for kw in range(3):
            co, ci = kw // sw, kw % sw
            tap = x_ref[0, pl.ds(ro, th), ri, ci, pl.ds(co, out_w), :]   # (th, out_w, C_in) bf16
            term = tap.astype(jnp.float32) * wdw_ref[kh * 3 + kw, :]     # f32 accumulation
            acc = term if acc is None else acc + term
    y1 = jnp.maximum(acc + b1_ref[0, :], 0.0)                            # (th, out_w, C_in) f32

    # Pointwise 1x1 conv: single-pass bf16 MXU matmul with f32 accumulation.
    y1 = y1.astype(jnp.bfloat16).reshape(th * out_w, -1)
    y2 = jnp.dot(y1, wpw_ref[...], preferred_element_type=jnp.float32)   # (M, C_out_p) f32
    y2 = jnp.maximum(y2 + b2_ref[0, :], 0.0)
    o_ref[0] = y2.reshape(th, out_w, -1).astype(o_ref.dtype)


def depthwise_separable_norm_conv2d(x_nchw, params, stride, *, tile_h=None):
    """Forward pass equivalent of DepthwiseSeparableNormConv2d (eval-mode BN)."""
    sh, sw = int(stride[0]), int(stride[1])
    n, c_in, h, w = x_nchw.shape
    c_out = params["pw_weight"].shape[0]

    out_h = (h + 2 - 3) // sh + 1
    out_w = (w + 2 - 3) // sw + 1

    # ---- row tiling: M = tile_h*out_w rows feed each 1x1 matmul (target ~512).
    # cdiv + padded output rows (sliced off below) instead of forcing a divisor.
    if tile_h is None:
        tile_h = max(1, 512 // max(1, out_w))
    tile_h = max(1, min(int(tile_h), out_h))
    n_tiles = -(-out_h // tile_h)
    out_h_pad = n_tiles * tile_h

    # ---- padded extents.
    # Width: cover every access sw*(out_w-1)+2, divisible by sw.
    wp = max(w + 2, sw * (out_w - 1) + 3)
    wp += (-wp) % sw
    # Row slab (per tile, halo included): tile_h*sh + 2 rows, padded to multiple of sh.
    slab_rows = tile_h * sh + 2
    slab_rows += (-slab_rows) % sh
    # Height: last slab must be fully in-bounds (extra bottom rows are zeros and
    # only feed discarded output rows).
    hp = max((n_tiles - 1) * tile_h * sh + slab_rows, h + 2)

    # ---- glue: NCHW -> NHWC, bf16, zero pad (1 px conv halo + coverage/alignment).
    x_nhwc = jnp.transpose(x_nchw, (0, 2, 3, 1)).astype(jnp.bfloat16)
    x_pad = jnp.pad(x_nhwc, ((0, 0), (1, hp - h - 1), (1, wp - w - 1), (0, 0)))

    # Overlapping halo'd row slabs -> each grid step streams only its own slab.
    # (pad + gather + phase transpose fuse into one XLA pass producing x_slab.)
    row_idx = (np.arange(n_tiles)[:, None] * (tile_h * sh)
               + np.arange(slab_rows)[None, :]).reshape(-1).astype(np.int32)
    x_slab = jnp.take(x_pad, jnp.asarray(row_idx), axis=1)           # (n, n_tiles*slab_rows, wp, C)
    x_slab = x_slab.reshape(n, n_tiles, slab_rows // sh, sh, wp // sw, sw, c_in)
    x_slab = jnp.transpose(x_slab, (0, 1, 2, 3, 5, 4, 6))            # col phase before outer col
    x_slab = x_slab.reshape(n * n_tiles, slab_rows // sh, sh, sw, wp // sw, c_in)

    # ---- fold eval-mode BN into the conv weights (only bias + ReLU stay in-kernel).
    scale1 = params["bn1_gamma"] / jnp.sqrt(params["bn1_var"] + _EPS)
    bias1 = (params["bn1_beta"] - params["bn1_mean"] * scale1)
    bias1 = bias1.reshape(1, c_in).astype(jnp.float32)
    # torch depthwise weight (C_in, 1, 3, 3) -> (9, C_in), scaled per channel.
    w_dw = jnp.transpose(params["dw_weight"][:, 0], (1, 2, 0)).reshape(9, c_in)
    w_dw = (w_dw * scale1[None, :]).astype(jnp.float32)

    scale2 = params["bn2_gamma"] / jnp.sqrt(params["bn2_var"] + _EPS)
    bias2 = params["bn2_beta"] - params["bn2_mean"] * scale2
    # torch pointwise weight (C_out, C_in, 1, 1) -> (C_in, C_out), scaled per out-chan.
    w_pw = jnp.transpose(params["pw_weight"][:, :, 0, 0], (1, 0)) * scale2[None, :]

    # Lane-dense output + full MXU N dim: pad C_out to a multiple of 128.
    c_out_p = -(-c_out // 128) * 128
    if c_out_p != c_out:
        w_pw = jnp.pad(w_pw, ((0, 0), (0, c_out_p - c_out)))
        bias2 = jnp.pad(bias2, ((0, c_out_p - c_out),))
    w_pw = w_pw.astype(jnp.bfloat16)
    bias2 = bias2.reshape(1, c_out_p).astype(jnp.float32)

    kernel = functools.partial(_fused_dw_pw_kernel, th=tile_h, out_w=out_w, sh=sh, sw=sw)
    y = pl.pallas_call(
        kernel,
        out_shape=jax.ShapeDtypeStruct((n, out_h_pad, out_w, c_out_p), jnp.float32),
        grid=(n, n_tiles),
        in_specs=[
            # One halo'd row slab per grid step (streamed, double-buffered by Pallas).
            pl.BlockSpec((1, slab_rows // sh, sh, sw, wp // sw, c_in),
                         lambda b, t: (b * n_tiles + t, 0, 0, 0, 0, 0)),
            # Weights / biases: constant index maps -> VMEM resident.
            pl.BlockSpec((9, c_in), lambda b, t: (0, 0)),
            pl.BlockSpec((1, c_in), lambda b, t: (0, 0)),
            pl.BlockSpec((c_in, c_out_p), lambda b, t: (0, 0)),
            pl.BlockSpec((1, c_out_p), lambda b, t: (0, 0)),
        ],
        out_specs=pl.BlockSpec((1, tile_h, out_w, c_out_p),
                               lambda b, t: (b, t, 0, 0)),
        compiler_params=pltpu.CompilerParams(
            # Each (b, t) writes a disjoint output block and carries no state ->
            # both axes are legal to shard across TensorCores (helps v7x at batch=1).
            dimension_semantics=("parallel", "parallel"),
            vmem_limit_bytes=32 * 1024 * 1024),
    )(x_slab, w_dw, bias1, w_pw, bias2)

    # Drop row / channel padding (fused by XLA into the final transpose), NHWC -> NCHW.
    y = y[:, :out_h, :, :c_out]
    return jnp.transpose(y, (0, 3, 1, 2))


def _reference(x_nchw, params, stride):
    """Plain-JAX f32 reference (matches PyTorch eval-mode forward)."""
    dn = ("NCHW", "OIHW", "NCHW")
    prec = lax.Precision.HIGHEST

    def bn_relu(t, g, b, m, v):
        t = (t - m[None, :, None, None]) / jnp.sqrt(v + _EPS)[None, :, None, None]
        t = t * g[None, :, None, None] + b[None, :, None, None]
        return jnp.maximum(t, 0.0)

    y = lax.conv_general_dilated(x_nchw, params["dw_weight"], window_strides=stride,
                                 padding=((1, 1), (1, 1)),
                                 feature_group_count=x_nchw.shape[1],
                                 dimension_numbers=dn, precision=prec)
    y = bn_relu(y, params["bn1_gamma"], params["bn1_beta"],
                params["bn1_mean"], params["bn1_var"])
    y = lax.conv_general_dilated(y, params["pw_weight"], window_strides=(1, 1),
                                 padding="VALID", dimension_numbers=dn,
                                 precision=prec)
    y = bn_relu(y, params["bn2_gamma"], params["bn2_beta"],
                params["bn2_mean"], params["bn2_var"])
    return y


def _make_params(key, c_in, c_out):
    ks = jax.random.split(key, 10)
    return {
        "dw_weight": 0.3 * jax.random.normal(ks[0], (c_in, 1, 3, 3), jnp.float32),
        "bn1_gamma": 1.0 + 0.1 * jax.random.normal(ks[1], (c_in,), jnp.float32),
        "bn1_beta": 0.1 * jax.random.normal(ks[2], (c_in,), jnp.float32),
        "bn1_mean": 0.1 * jax.random.normal(ks[3], (c_in,), jnp.float32),
        "bn1_var": 0.5 + jnp.abs(jax.random.normal(ks[4], (c_in,), jnp.float32)),
        "pw_weight": 0.3 * jax.random.normal(ks[5], (c_out, c_in, 1, 1), jnp.float32),
        "bn2_gamma": 1.0 + 0.1 * jax.random.normal(ks[6], (c_out,), jnp.float32),
        "bn2_beta": 0.1 * jax.random.normal(ks[7], (c_out,), jnp.float32),
        "bn2_mean": 0.1 * jax.random.normal(ks[8], (c_out,), jnp.float32),
        "bn2_var": 0.5 + jnp.abs(jax.random.normal(ks[9], (c_out,), jnp.float32)),
    }


def _check(out, ref, tag):
    err = float(jnp.max(jnp.abs(out - ref)))
    # bf16 activations / pointwise matmul vs. f32 HIGHEST reference -> ~0.2-0.6%
    # relative error; tolerance chosen accordingly.
    assert jnp.allclose(out, ref, atol=2e-1, rtol=2e-2), (tag, err)


if __name__ == "__main__":
    key = jax.random.PRNGKey(0)
    k0, k1, k2, k3, k4, k5 = jax.random.split(key, 6)

    # Case 1: stride (2, 2) -- exercises the row/col stride phase axes.
    n, c_in, c_out, h, w = 2, 4, 8, 16, 16
    x1 = jax.random.normal(k0, (n, c_in, h, w), jnp.float32)
    p1 = _make_params(k1, c_in, c_out)
    out1 = jax.block_until_ready(depthwise_separable_norm_conv2d(x1, p1, (2, 2)))
    ref1 = _reference(x1, p1, (2, 2))
    assert out1.shape == ref1.shape == (n, c_out, h // 2, w // 2)
    _check(out1, ref1, "case1")

    # Case 2: stride (1, 1), explicit small row tile -- exercises the multi-slab
    # streaming grid (program_id(1) > 0) and output block indexing.
    c_in2, c_out2 = 8, 16
    x2 = jax.random.normal(k2, (n, c_in2, h, w), jnp.float32)
    p2 = _make_params(k3, c_in2, c_out2)
    out2 = jax.block_until_ready(
        depthwise_separable_norm_conv2d(x2, p2, (1, 1), tile_h=4))
    ref2 = _reference(x2, p2, (1, 1))
    assert out2.shape == ref2.shape == (n, c_out2, h, w)
    _check(out2, ref2, "case2")

    # Case 3: odd spatial size + ragged row tiling (out_h % tile_h != 0), stride (2, 2).
    n3, c_in3, c_out3, h3, w3 = 1, 8, 8, 11, 11
    x3 = jax.random.normal(k4, (n3, c_in3, h3, w3), jnp.float32)
    p3 = _make_params(k5, c_in3, c_out3)
    out3 = jax.block_until_ready(
        depthwise_separable_norm_conv2d(x3, p3, (2, 2), tile_h=4))
    ref3 = _reference(x3, p3, (2, 2))
    assert out3.shape == ref3.shape == (n3, c_out3, 6, 6)
    _check(out3, ref3, "case3")

    print("KERNEL_OK")
</pallas_src>

<mosaic_0001>
module attributes {stable_mosaic.version = 11 : i64} {
  func.func @_fused_dw_pw_kernel(%arg0: i32, %arg1: i32, %arg2: memref<1x9x2x2x9x4xbf16, #tpu.memory_space<vmem>>, %arg3: memref<9x4xf32, #tpu.memory_space<vmem>>, %arg4: memref<1x4xf32, #tpu.memory_space<vmem>>, %arg5: memref<4x128xbf16, #tpu.memory_space<vmem>>, %arg6: memref<1x128xf32, #tpu.memory_space<vmem>>, %arg7: memref<1x8x8x128xf32, #tpu.memory_space<vmem>>) attributes {dimension_semantics = [#tpu.dimension_semantics<parallel>, #tpu.dimension_semantics<parallel>], iteration_bounds = array<i64: 2, 1>, scalar_prefetch = 0 : i64, scratch_operands = 0 : i64, tpu.core_type = #tpu.core_type<tc>, window_params = [{transform_indices = @transform_0, window_bounds = array<i64: 1, 9, 2, 2, 9, 4>}, {pipeline_mode = #tpu.pipeline_mode<synchronous>, transform_indices = @transform_1, window_bounds = array<i64: 9, 4>}, {pipeline_mode = #tpu.pipeline_mode<synchronous>, transform_indices = @transform_2, window_bounds = array<i64: 1, 4>}, {pipeline_mode = #tpu.pipeline_mode<synchronous>, transform_indices = @transform_3, window_bounds = array<i64: 4, 128>}, {pipeline_mode = #tpu.pipeline_mode<synchronous>, transform_indices = @transform_4, window_bounds = array<i64: 1, 128>}, {transform_indices = @transform_5, window_bounds = array<i64: 1, 8, 8, 128>}]} {
    %c0 = arith.constant 0 : index
    %c0_0 = arith.constant 0 : index
    %c0_1 = arith.constant 0 : index
    %c0_2 = arith.constant 0 : index
    %c0_3 = arith.constant 0 : index
    %c0_4 = arith.constant 0 : index
    %0 = vector.load %arg2[%c0, %c0_0, %c0_1, %c0_2, %c0_3, %c0_4] : memref<1x9x2x2x9x4xbf16, #tpu.memory_space<vmem>>, vector<1x8x1x1x8x4xbf16>
    %1 = vector.shape_cast %0 : vector<1x8x1x1x8x4xbf16> to vector<8x8x4xbf16>
    %2 = arith.extf %1 : vector<8x8x4xbf16> to vector<8x8x4xf32>
    %c0_5 = arith.constant 0 : index
    %c0_6 = arith.constant 0 : index
    %3 = vector.load %arg3[%c0_5, %c0_6] : memref<9x4xf32, #tpu.memory_space<vmem>>, vector<1x4xf32>
    %4 = vector.shape_cast %3 : vector<1x4xf32> to vector<4xf32>
    %5 = vector.shape_cast %4 : vector<4xf32> to vector<1x1x4xf32>
    %6 = vector.broadcast %5 : vector<1x1x4xf32> to vector<8x8x4xf32>
    %7 = arith.mulf %2, %6 : vector<8x8x4xf32>
    %c0_7 = arith.constant 0 : index
    %c0_8 = arith.constant 0 : index
    %c0_9 = arith.constant 0 : index
    %c1 = arith.constant 1 : index
    %c0_10 = arith.constant 0 : index
    %c0_11 = arith.constant 0 : index
    %8 = vector.load %arg2[%c0_7, %c0_8, %c0_9, %c1, %c0_10, %c0_11] : memref<1x9x2x2x9x4xbf16, #tpu.memory_space<vmem>>, vector<1x8x1x1x8x4xbf16>
    %9 = vector.shape_cast %8 : vector<1x8x1x1x8x4xbf16> to vector<8x8x4xbf16>
    %10 = arith.extf %9 : vector<8x8x4xbf16> to vector<8x8x4xf32>
    %c1_12 = arith.constant 1 : index
    %c0_13 = arith.constant 0 : index
    %11 = vector.load %arg3[%c1_12, %c0_13] : memref<9x4xf32, #tpu.memory_space<vmem>>, vector<1x4xf32>
    %12 = vector.shape_cast %11 : vector<1x4xf32> to vector<4xf32>
    %13 = vector.shape_cast %12 : vector<4xf32> to vector<1x1x4xf32>
    %14 = vector.broadcast %13 : vector<1x1x4xf32> to vector<8x8x4xf32>
    %15 = arith.mulf %10, %14 : vector<8x8x4xf32>
    %16 = arith.addf %7, %15 : vector<8x8x4xf32>
    %c0_14 = arith.constant 0 : index
    %c0_15 = arith.constant 0 : index
    %c0_16 = arith.constant 0 : index
    %c0_17 = arith.constant 0 : index
    %c1_18 = arith.constant 1 : index
    %c0_19 = arith.constant 0 : index
    %17 = vector.load %arg2[%c0_14, %c0_15, %c0_16, %c0_17, %c1_18, %c0_19] : memref<1x9x2x2x9x4xbf16, #tpu.memory_space<vmem>>, vector<1x8x1x1x8x4xbf16>
    %18 = vector.shape_cast %17 : vector<1x8x1x1x8x4xbf16> to vector<8x8x4xbf16>
    %19 = arith.extf %18 : vector<8x8x4xbf16> to vector<8x8x4xf32>
    %c2 = arith.constant 2 : index
    %c0_20 = arith.constant 0 : index
    %20 = vector.load %arg3[%c2, %c0_20] : memref<9x4xf32, #tpu.memory_space<vmem>>, vector<1x4xf32>
    %21 = vector.shape_cast %20 : vector<1x4xf32> to vector<4xf32>
    %22 = vector.shape_cast %21 : vector<4xf32> to vector<1x1x4xf32>
    %23 = vector.broadcast %22 : vector<1x1x4xf32> to vector<8x8x4xf32>
    %24 = arith.mulf %19, %23 : vector<8x8x4xf32>
    %25 = arith.addf %16, %24 : vector<8x8x4xf32>
    %c0_21 = arith.constant 0 : index
    %c0_22 = arith.constant 0 : index
    %c1_23 = arith.constant 1 : index
    %c0_24 = arith.constant 0 : index
    %c0_25 = arith.constant 0 : index
    %c0_26 = arith.constant 0 : index
    %26 = vector.load %arg2[%c0_21, %c0_22, %c1_23, %c0_24, %c0_25, %c0_26] : memref<1x9x2x2x9x4xbf16, #tpu.memory_space<vmem>>, vector<1x8x1x1x8x4xbf16>
    %27 = vector.shape_cast %26 : vector<1x8x1x1x8x4xbf16> to vector<8x8x4xbf16>
    %28 = arith.extf %27 : vector<8x8x4xbf16> to vector<8x8x4xf32>
    %c3 = arith.constant 3 : index
    %c0_27 = arith.constant 0 : index
    %29 = vector.load %arg3[%c3, %c0_27] : memref<9x4xf32, #tpu.memory_space<vmem>>, vector<1x4xf32>
    %30 = vector.shape_cast %29 : vector<1x4xf32> to vector<4xf32>
    %31 = vector.shape_cast %30 : vector<4xf32> to vector<1x1x4xf32>
    %32 = vector.broadcast %31 : vector<1x1x4xf32> to vector<8x8x4xf32>
    %33 = arith.mulf %28, %32 : vector<8x8x4xf32>
    %34 = arith.addf %25, %33 : vector<8x8x4xf32>
    %c0_28 = arith.constant 0 : index
    %c0_29 = arith.constant 0 : index
    %c1_30 = arith.constant 1 : index
    %c1_31 = arith.constant 1 : index
    %c0_32 = arith.constant 0 : index
    %c0_33 = arith.constant 0 : index
    %35 = vector.load %arg2[%c0_28, %c0_29, %c1_30, %c1_31, %c0_32, %c0_33] : memref<1x9x2x2x9x4xbf16, #tpu.memory_space<vmem>>, vector<1x8x1x1x8x4xbf16>
    %36 = vector.shape_cast %35 : vector<1x8x1x1x8x4xbf16> to vector<8x8x4xbf16>
    %37 = arith.extf %36 : vector<8x8x4xbf16> to vector<8x8x4xf32>
    %c4 = arith.constant 4 : index
    %c0_34 = arith.constant 0 : index
    %38 = vector.load %arg3[%c4, %c0_34] : memref<9x4xf32, #tpu.memory_space<vmem>>, vector<1x4xf32>
    %39 = vector.shape_cast %38 : vector<1x4xf32> to vector<4xf32>
    %40 = vector.shape_cast %39 : vector<4xf32> to vector<1x1x4xf32>
    %41 = vector.broadcast %40 : vector<1x1x4xf32> to vector<8x8x4xf32>
    %42 = arith.mulf %37, %41 : vector<8x8x4xf32>
    %43 = arith.addf %34, %42 : vector<8x8x4xf32>
    %c0_35 = arith.constant 0 : index
    %c0_36 = arith.constant 0 : index
    %c1_37 = arith.constant 1 : index
    %c0_38 = arith.constant 0 : index
    %c1_39 = arith.constant 1 : index
    %c0_40 = arith.constant 0 : index
    %44 = vector.load %arg2[%c0_35, %c0_36, %c1_37, %c0_38, %c1_39, %c0_40] : memref<1x9x2x2x9x4xbf16, #tpu.memory_space<vmem>>, vector<1x8x1x1x8x4xbf16>
    %45 = vector.shape_cast %44 : vector<1x8x1x1x8x4xbf16> to vector<8x8x4xbf16>
    %46 = arith.extf %45 : vector<8x8x4xbf16> to vector<8x8x4xf32>
    %c5 = arith.constant 5 : index
    %c0_41 = arith.constant 0 : index
    %47 = vector.load %arg3[%c5, %c0_41] : memref<9x4xf32, #tpu.memory_space<vmem>>, vector<1x4xf32>
    %48 = vector.shape_cast %47 : vector<1x4xf32> to vector<4xf32>
    %49 = vector.shape_cast %48 : vector<4xf32> to vector<1x1x4xf32>
    %50 = vector.broadcast %49 : vector<1x1x4xf32> to vector<8x8x4xf32>
    %51 = arith.mulf %46, %50 : vector<8x8x4xf32>
    %52 = arith.addf %43, %51 : vector<8x8x4xf32>
    %c0_42 = arith.constant 0 : index
    %c1_43 = arith.constant 1 : index
    %c0_44 = arith.constant 0 : index
    %c0_45 = arith.constant 0 : index
    %c0_46 = arith.constant 0 : index
    %c0_47 = arith.constant 0 : index
    %53 = vector.load %arg2[%c0_42, %c1_43, %c0_44, %c0_45, %c0_46, %c0_47] : memref<1x9x2x2x9x4xbf16, #tpu.memory_space<vmem>>, vector<1x8x1x1x8x4xbf16>
    %54 = vector.shape_cast %53 : vector<1x8x1x1x8x4xbf16> to vector<8x8x4xbf16>
    %55 = arith.extf %54 : vector<8x8x4xbf16> to vector<8x8x4xf32>
    %c6 = arith.constant 6 : index
    %c0_48 = arith.constant 0 : index
    %56 = vector.load %arg3[%c6, %c0_48] : memref<9x4xf32, #tpu.memory_space<vmem>>, vector<1x4xf32>
    %57 = vector.shape_cast %56 : vector<1x4xf32> to vector<4xf32>
    %58 = vector.shape_cast %57 : vector<4xf32> to vector<1x1x4xf32>
    %59 = vector.broadcast %58 : vector<1x1x4xf32> to vector<8x8x4xf32>
    %60 = arith.mulf %55, %59 : vector<8x8x4xf32>
    %61 = arith.addf %52, %60 : vector<8x8x4xf32>
    %c0_49 = arith.constant 0 : index
    %c1_50 = arith.constant 1 : index
    %c0_51 = arith.constant 0 : index
    %c1_52 = arith.constant 1 : index
    %c0_53 = arith.constant 0 : index
    %c0_54 = arith.constant 0 : index
    %62 = vector.load %arg2[%c0_49, %c1_50, %c0_51, %c1_52, %c0_53, %c0_54] : memref<1x9x2x2x9x4xbf16, #tpu.memory_space<vmem>>, vector<1x8x1x1x8x4xbf16>
    %63 = vector.shape_cast %62 : vector<1x8x1x1x8x4xbf16> to vector<8x8x4xbf16>
    %64 = arith.extf %63 : vector<8x8x4xbf16> to vector<8x8x4xf32>
    %c7 = arith.constant 7 : index
    %c0_55 = arith.constant 0 : index
    %65 = vector.load %arg3[%c7, %c0_55] : memref<9x4xf32, #tpu.memory_space<vmem>>, vector<1x4xf32>
    %66 = vector.shape_cast %65 : vector<1x4xf32> to vector<4xf32>
    %67 = vector.shape_cast %66 : vector<4xf32> to vector<1x1x4xf32>
    %68 = vector.broadcast %67 : vector<1x1x4xf32> to vector<8x8x4xf32>
    %69 = arith.mulf %64, %68 : vector<8x8x4xf32>
    %70 = arith.addf %61, %69 : vector<8x8x4xf32>
    %c0_56 = arith.constant 0 : index
    %c1_57 = arith.constant 1 : index
    %c0_58 = arith.constant 0 : index
    %c0_59 = arith.constant 0 : index
    %c1_60 = arith.constant 1 : index
    %c0_61 = arith.constant 0 : index
    %71 = vector.load %arg2[%c0_56, %c1_57, %c0_58, %c0_59, %c1_60, %c0_61] : memref<1x9x2x2x9x4xbf16, #tpu.memory_space<vmem>>, vector<1x8x1x1x8x4xbf16>
    %72 = vector.shape_cast %71 : vector<1x8x1x1x8x4xbf16> to vector<8x8x4xbf16>
    %73 = arith.extf %72 : vector<8x8x4xbf16> to vector<8x8x4xf32>
    %c8 = arith.constant 8 : index
    %c0_62 = arith.constant 0 : index
    %74 = vector.load %arg3[%c8, %c0_62] : memref<9x4xf32, #tpu.memory_space<vmem>>, vector<1x4xf32>
    %75 = vector.shape_cast %74 : vector<1x4xf32> to vector<4xf32>
    %76 = vector.shape_cast %75 : vector<4xf32> to vector<1x1x4xf32>
    %77 = vector.broadcast %76 : vector<1x1x4xf32> to vector<8x8x4xf32>
    %78 = arith.mulf %73, %77 : vector<8x8x4xf32>
    %79 = arith.addf %70, %78 : vector<8x8x4xf32>
    %c0_63 = arith.constant 0 : index
    %c0_64 = arith.constant 0 : index
    %80 = vector.load %arg4[%c0_63, %c0_64] : memref<1x4xf32, #tpu.memory_space<vmem>>, vector<1x4xf32>
    %81 = vector.shape_cast %80 : vector<1x4xf32> to vector<4xf32>
    %82 = vector.shape_cast %81 : vector<4xf32> to vector<1x1x4xf32>
    %83 = vector.broadcast %82 : vector<1x1x4xf32> to vector<8x8x4xf32>
    %84 = arith.addf %79, %83 : vector<8x8x4xf32>
    %cst = arith.constant 0.000000e+00 : f32
    %85 = vector.broadcast %cst : f32 to vector<8x8x4xf32>
    %86 = arith.maximumf %84, %85 : vector<8x8x4xf32>
    %87 = arith.truncf %86 : vector<8x8x4xf32> to vector<8x8x4xbf16>
    %88 = vector.shape_cast %87 : vector<8x8x4xbf16> to vector<64x4xbf16>
    %c0_65 = arith.constant 0 : index
    %c0_66 = arith.constant 0 : index
    %89 = vector.load %arg5[%c0_65, %c0_66] : memref<4x128xbf16, #tpu.memory_space<vmem>>, vector<4x128xbf16>
    %cst_67 = arith.constant dense<0.000000e+00> : vector<64x128xf32>
    %90 = tpu.matmul %88, %89, %cst_67 {dimension_numbers = #tpu.dot_dimension_numbers<[1], [0], [0], [1], [0, 0, 1, 1], [], []>} : vector<64x4xbf16>, vector<4x128xbf16>, vector<64x128xf32> -> vector<64x128xf32>
    %c0_68 = arith.constant 0 : index
    %c0_69 = arith.constant 0 : index
    %91 = vector.load %arg6[%c0_68, %c0_69] : memref<1x128xf32, #tpu.memory_space<vmem>>, vector<1x128xf32>
    %92 = vector.shape_cast %91 : vector<1x128xf32> to vector<128xf32>
    %93 = vector.shape_cast %92 : vector<128xf32> to vector<1x128xf32>
    %94 = vector.broadcast %93 : vector<1x128xf32> to vector<64x128xf32>
    %95 = arith.addf %90, %94 : vector<64x128xf32>
    %cst_70 = arith.constant 0.000000e+00 : f32
    %96 = vector.broadcast %cst_70 : f32 to vector<64x128xf32>
    %97 = arith.maximumf %95, %96 : vector<64x128xf32>
    %98 = vector.shape_cast %97 : vector<64x128xf32> to vector<8x8x128xf32>
    %c0_71 = arith.constant 0 : index
    %c0_72 = arith.constant 0 : index
    %c0_73 = arith.constant 0 : index
    %c0_74 = arith.constant 0 : index
    %99 = vector.load %arg7[%c0_71, %c0_72, %c0_73, %c0_74] : memref<1x8x8x128xf32, #tpu.memory_space<vmem>>, vector<1x8x8x128xf32>
    %100 = vector.shape_cast %99 : vector<1x8x8x128xf32> to vector<8x8x128xf32>
    %101 = vector.shape_cast %98 : vector<8x8x128xf32> to vector<1x8x8x128xf32>
    tpu.vector_store %arg7[%c0_71, %c0_72, %c0_73, %c0_74], %101 {strides = array<i32>} : memref<1x8x8x128xf32, #tpu.memory_space<vmem>>, vector<1x8x8x128xf32>,
    return
  }
  func.func @transform_0(%arg0: i32, %arg1: i32) -> (i32, i32, i32, i32, i32, i32) {
    %c1_i32 = arith.constant 1 : i32
    %0 = arith.muli %arg0, %c1_i32 : i32
    %1 = arith.addi %0, %arg1 : i32
    %c0_i32 = arith.constant 0 : i32
    %c0_i32_0 = arith.constant 0 : i32
    %c0_i32_1 = arith.constant 0 : i32
    %c0_i32_2 = arith.constant 0 : i32
    %c0_i32_3 = arith.constant 0 : i32
    %c0_i32_4 = arith.constant 0 : i32
    return %1, %c0_i32, %c0_i32_0, %c0_i32_1, %c0_i32_2, %c0_i32_3 : i32, i32, i32, i32, i32, i32
  }
  func.func @transform_1(%arg0: i32, %arg1: i32) -> (i32, i32) {
    %c0_i32 = arith.constant 0 : i32
    %c0_i32_0 = arith.constant 0 : i32
    %c0_i32_1 = arith.constant 0 : i32
    return %c0_i32, %c0_i32_0 : i32, i32
  }
  func.func @transform_2(%arg0: i32, %arg1: i32) -> (i32, i32) {
    %c0_i32 = arith.constant 0 : i32
    %c0_i32_0 = arith.constant 0 : i32
    %c0_i32_1 = arith.constant 0 : i32
    return %c0_i32, %c0_i32_0 : i32, i32
  }
  func.func @transform_3(%arg0: i32, %arg1: i32) -> (i32, i32) {
    %c0_i32 = arith.constant 0 : i32
    %c0_i32_0 = arith.constant 0 : i32
    %c0_i32_1 = arith.constant 0 : i32
    return %c0_i32, %c0_i32_0 : i32, i32
  }
  func.func @transform_4(%arg0: i32, %arg1: i32) -> (i32, i32) {
    %c0_i32 = arith.constant 0 : i32
    %c0_i32_0 = arith.constant 0 : i32
    %c0_i32_1 = arith.constant 0 : i32
    return %c0_i32, %c0_i32_0 : i32, i32
  }
  func.func @transform_5(%arg0: i32, %arg1: i32) -> (i32, i32, i32, i32) {
    %c0_i32 = arith.constant 0 : i32
    %c0_i32_0 = arith.constant 0 : i32
    %c0_i32_1 = arith.constant 0 : i32
    return %arg0, %arg1, %c0_i32, %c0_i32_0 : i32, i32, i32, i32
  }
}

</mosaic_0001>

<llo_original>
// kernel: tpu_custom_call.1
$region0: #{tpu_custom_call.1}
  #allocation0 [shape = 'u32[]', space=smem, size = 0x4, offset = 0x4, fixed_abs, tag = 'smem constant byte address 0x4 - core index']
  #allocation1 [shape = 'u32[144,128]{1,0:T(1,128)}', space=vmem, size = 0x12000, scoped, tag = 'internal scratch']
  %s0 = inlined_call_operand.vmem [shape: bf16[2,9,2,2,9,4], index: 0, kind: input, shape index: {}]
  %s1 = inlined_call_operand.vmem [shape: f32[9,4], index: 1, kind: input, shape index: {}]
  %s2 = inlined_call_operand.vmem [shape: f32[1,4], index: 2, kind: input, shape index: {}]
  %s3 = inlined_call_operand.vmem [shape: bf16[4,128], index: 3, kind: input, shape index: {}]
  %s4 = inlined_call_operand.vmem [shape: f32[1,128], index: 4, kind: input, shape index: {}]
  %s5 = inlined_call_operand.hbm [shape: f32[2,8,8,128], index: 5, kind: output, shape index: {}]
  %s6 = sld [smem:[#allocation0]]
  $region53: #{tpu_custom_call.1} parent=0
    _
  %s8 = ssub.s32 1, %s6
  %s9 = scalar_select 0, %s8, %s6
  $region1: #{tpu_custom_call.1} parent=0
    #allocation2 [shape = 'u8[65536]{0}', space=vmem, size = 0x10000, scoped, tag = 'output window, operand 0']
    #allocation3 [shape = 's32[2]{0}', space=sflag, size = 0x8, scoped, tag = 'scoped memory for tpu_custom_call.1']
    %10 = vsyncpa [#allocation3], 0
    %s11 = scalar_lea.sflag [#allocation3], 1
    %12 = vsyncpa %s11, 0
    loop: start=0, step=1, limit=4
    $region2: #{tpu_custom_call.1} parent=1 // loop_pre_header
      _
    $region3: #{tpu_custom_call.1} parent=1 // loop_header
      %s14 = sphi 0, %s18
      %p15 = scmp.ge.s32.totalorder %s14, 4
      %s21 = sphi 0, %s33
      %s22 = sphi 0, %s29
      %s23 = sphi 0, %s21
      %s24 = sphi 0, %s22
      %s25 = sphi 0, %s23
      %s26 = sphi 0, %s24
      %s38 = sphi 0, %s40
      %s41 = sphi 0, %s38
      %s42 = sphi 0, %s41
      %s58 = sphi 0, %s42
      %s62 = sphi 0, %s62
      %s64 = sphi 0, %s62
      %s65 = sphi 0, %s64
      %s79 = sphi 0, %s65
      %s83 = sphi 0, %s83
      %s85 = sphi 0, %s83
      %s86 = sphi 0, %s85
      %s100 = sphi 0, %s86
      %s104 = sphi 0, %s104
      %s106 = sphi 0, %s104
      %s107 = sphi 0, %s106
      %s121 = sphi 0, %s107
      %s125 = sphi 0, %s125
      %s127 = sphi 0, %s125
      %s128 = sphi 0, %s127
      %s142 = sphi 0, %s128
      %s150 = sphi 0, %s152
      %s153 = sphi 0, %s150
      %s154 = sphi 0, %s153
      %s170 = sphi 0, %s154
    $region4: #{tpu_custom_call.1} parent=1 // loop_header_branch
      %17 = sbr.rel (%p15) target = $region8
    $region5: #{tpu_custom_call.1} parent=1 // loop_body
      %s19 = ssub.s32 %s14, 1
      %s20 = ssub.s32 %s14, 2
      %s27 = sadd.s32 1, %s22
      %p28 = scmp.ge.s32.totalorder %s27, 1
      %s29 = scalar_select %p28, 0, %s27
      %s30 = sadd.s32 1, %s21
      %s31 = scalar_select %p28, %s30, %s21
      %p32 = scmp.ge.s32.totalorder %s31, 2
      %s33 = scalar_select %p32, 0, %s31
      %s34 = sadd.s32 %s21, %s22
      %s35 = sadd.s32 %s33, %s29
      %s36 = ssub.s32 %s34, %s35
      %p37 = scmp.eq.s32.totalorder %s36, 0
      %s39 = sadd.s32 %s38, 1
      %s40 = scalar_select %p37, %s38, %s39
      %p43 = pneg %p37
      %p44 = scmp.eq.s32.totalorder %s14, 1
      %p45 = por %p43, %p44
      %p46 = scmp.ne.s32.totalorder %s38, %s41
      %p47 = scmp.eq.s32.totalorder %s14, 0
      %p48 = por %p46, %p47
      %p49 = scmp.ne.s32.totalorder %s38, %s41
      %p50 = scmp.eq.s32.totalorder %s19, 1
      %p51 = por %p49, %p50
      %p52 = scmp.ne.s32.totalorder %s41, %s42
      %p53 = scmp.eq.s32.totalorder %s19, 0
      %p54 = por %p52, %p53
      %p55 = scmp.ne.s32.totalorder %s41, %s42
      %p56 = scmp.eq.s32.totalorder %s20, 1
      %p57 = por %p55, %p56
      %p59 = scmp.ne.s32.totalorder %s42, %s58
      %p60 = scmp.eq.s32.totalorder %s20, 0
      %p61 = por %p59, %p60
      %s63 = sadd.s32 %s62, 1
      %p66 = scmp.eq.s32.totalorder %s14, 1
      %p67 = scmp.ne.s32.totalorder %s62, %s64
      %p68 = scmp.eq.s32.totalorder %s14, 0
      %p69 = por %p67, %p68
      %p70 = scmp.ne.s32.totalorder %s62, %s64
      %p71 = scmp.eq.s32.totalorder %s19, 1
      %p72 = por %p70, %p71
      %p73 = scmp.ne.s32.totalorder %s64, %s65
      %p74 = scmp.eq.s32.totalorder %s19, 0
      %p75 = por %p73, %p74
      %p76 = scmp.ne.s32.totalorder %s64, %s65
      %p77 = scmp.eq.s32.totalorder %s20, 1
      %p78 = por %p76, %p77
      %p80 = scmp.ne.s32.totalorder %s65, %s79
      %p81 = scmp.eq.s32.totalorder %s20, 0
      %p82 = por %p80, %p81
      %s84 = sadd.s32 %s83, 1
      %p87 = scmp.eq.s32.totalorder %s14, 1
      %p88 = scmp.ne.s32.totalorder %s83, %s85
      %p89 = scmp.eq.s32.totalorder %s14, 0
      %p90 = por %p88, %p89
      %p91 = scmp.ne.s32.totalorder %s83, %s85
      %p92 = scmp.eq.s32.totalorder %s19, 1
      %p93 = por %p91, %p92
      %p94 = scmp.ne.s32.totalorder %s85, %s86
      %p95 = scmp.eq.s32.totalorder %s19, 0
      %p96 = por %p94, %p95
      %p97 = scmp.ne.s32.totalorder %s85, %s86
      %p98 = scmp.eq.s32.totalorder %s20, 1
      %p99 = por %p97, %p98
      %p101 = scmp.ne.s32.totalorder %s86, %s100
      %p102 = scmp.eq.s32.totalorder %s20, 0
      %p103 = por %p101, %p102
      %s105 = sadd.s32 %s104, 1
      %p108 = scmp.eq.s32.totalorder %s14, 1
      %p109 = scmp.ne.s32.totalorder %s104, %s106
      %p110 = scmp.eq.s32.totalorder %s14, 0
      %p111 = por %p109, %p110
      %p112 = scmp.ne.s32.totalorder %s104, %s106
      %p113 = scmp.eq.s32.totalorder %s19, 1
      %p114 = por %p112, %p113
      %p115 = scmp.ne.s32.totalorder %s106, %s107
      %p116 = scmp.eq.s32.totalorder %s19, 0
      %p117 = por %p115, %p116
      %p118 = scmp.ne.s32.totalorder %s106, %s107
      %p119 = scmp.eq.s32.totalorder %s20, 1
      %p120 = por %p118, %p119
      %p122 = scmp.ne.s32.totalorder %s107, %s121
      %p123 = scmp.eq.s32.totalorder %s20, 0
      %p124 = por %p122, %p123
      %s126 = sadd.s32 %s125, 1
      %p129 = scmp.eq.s32.totalorder %s14, 1
      %p130 = scmp.ne.s32.totalorder %s125, %s127
      %p131 = scmp.eq.s32.totalorder %s14, 0
      %p132 = por %p130, %p131
      %p133 = scmp.ne.s32.totalorder %s125, %s127
      %p134 = scmp.eq.s32.totalorder %s19, 1
      %p135 = por %p133, %p134
      %p136 = scmp.ne.s32.totalorder %s127, %s128
      %p137 = scmp.eq.s32.totalorder %s19, 0
      %p138 = por %p136, %p137
      %p139 = scmp.ne.s32.totalorder %s127, %s128
      %p140 = scmp.eq.s32.totalorder %s20, 1
      %p141 = por %p139, %p140
      %p143 = scmp.ne.s32.totalorder %s128, %s142
      %p144 = scmp.eq.s32.totalorder %s20, 0
      %p145 = por %p143, %p144
      %s146 = ssub.s32 %s21, %s33
      %s147 = ssub.s32 %s22, %s29
      %s148 = sor.u32 %s146, %s147
      %p149 = scmp.eq.s32.totalorder %s148, 0
      %s151 = sadd.s32 %s150, 1
      %s152 = scalar_select %p149, %s150, %s151
      %p155 = pneg %p149
      %p156 = scmp.eq.s32.totalorder %s14, 1
      %p157 = por %p155, %p156
      %p158 = scmp.ne.s32.totalorder %s150, %s153
      %p159 = scmp.eq.s32.totalorder %s14, 0
      %p160 = por %p158, %p159
      %p161 = scmp.ne.s32.totalorder %s150, %s153
      %p162 = scmp.eq.s32.totalorder %s19, 1
      %p163 = por %p161, %p162
      %p164 = scmp.ne.s32.totalorder %s153, %s154
      %p165 = scmp.eq.s32.totalorder %s19, 0
      %p166 = por %p164, %p165
      %p167 = scmp.ne.s32.totalorder %s153, %s154
      %p168 = scmp.eq.s32.totalorder %s20, 1
      %p169 = por %p167, %p168
      %p171 = scmp.ne.s32.totalorder %s154, %s170
      %p172 = scmp.eq.s32.totalorder %s20, 0
      %p173 = por %p171, %p172
      %p174 = scmp.le.s32.totalorder 1, %s14
      %p175 = scmp.lt.s32.totalorder %s14, 3
      %p176 = pnand %p174, %p175
      %p177 = pneg %p176
      // Predicated region
      $region9: #{tpu_custom_call.1} parent=5 // pred_check
        _
      $region10: #{tpu_custom_call.1} parent=5 // pred_check_branch
        %179 = sbr.rel (%p176) target = $region12
      $region11: #{tpu_custom_call.1} parent=5 // pred_region
        %s180 = ssub.s32 %s14, 1
        // Predicated region
        $region13: #{tpu_custom_call.1} parent=11 // pred_check
          %p181 = pneg %p75
        $region14: #{tpu_custom_call.1} parent=11 // pred_check_branch
          %183 = sbr.rel (%p181) target = $region16
        $region15: #{tpu_custom_call.1} parent=11 // pred_region
          _
        $region16: #{tpu_custom_call.1} parent=11 // pred_fallthru
          _
        // Predicated region
        $region17: #{tpu_custom_call.1} parent=11 // pred_check
          %p184 = pneg %p96
        $region18: #{tpu_custom_call.1} parent=11 // pred_check_branch
          %186 = sbr.rel (%p184) target = $region20
        $region19: #{tpu_custom_call.1} parent=11 // pred_region
          _
        $region20: #{tpu_custom_call.1} parent=11 // pred_fallthru
          _
        // Predicated region
        $region21: #{tpu_custom_call.1} parent=11 // pred_check
          %p187 = pneg %p117
        $region22: #{tpu_custom_call.1} parent=11 // pred_check_branch
          %189 = sbr.rel (%p187) target = $region24
        $region23: #{tpu_custom_call.1} parent=11 // pred_region
          _
        $region24: #{tpu_custom_call.1} parent=11 // pred_fallthru
          _
        // Predicated region
        $region25: #{tpu_custom_call.1} parent=11 // pred_check
          %p190 = pneg %p138
        $region26: #{tpu_custom_call.1} parent=11 // pred_check_branch
          %192 = sbr.rel (%p190) target = $region28
        $region27: #{tpu_custom_call.1} parent=11 // pred_region
          _
        $region28: #{tpu_custom_call.1} parent=11 // pred_fallthru
          _
      $region12: #{tpu_custom_call.1} parent=5 // pred_fallthru
        _
      %p193 = scmp.lt.s32.totalorder %s14, 2
      // Predicated region
      $region29: #{tpu_custom_call.1} parent=5 // pred_check
        %p194 = pneg %p193
      $region30: #{tpu_custom_call.1} parent=5 // pred_check_branch
        %196 = sbr.rel (%p194) target = $region32
      $region31: #{tpu_custom_call.1} parent=5 // pred_region
        // Predicated region
        $region33: #{tpu_custom_call.1} parent=31 // pred_check
          %p197 = pneg %p48
        $region34: #{tpu_custom_call.1} parent=31 // pred_check_branch
          %199 = sbr.rel (%p197) target = $region36
        $region35: #{tpu_custom_call.1} parent=31 // pred_region
          %s200 = sadd.s32 %s21, %s22
          %p201 = scmp.lt.s32.totalorder %s200, 1
          %s202 = scalar_select %p201, %s200, 1
          %s203 = smul.addr %s202, 72
          %s204 = smul.addr %s203, 4
          %s205 = scalar_lea.vmem %s0, %s204
          %s206 = sadd.s32 %s21, %s22
        $region36: #{tpu_custom_call.1} parent=31 // pred_fallthru
          _
      $region32: #{tpu_custom_call.1} parent=5 // pred_fallthru
        _
      %p207 = scmp.le.s32.totalorder 1, %s14
      %p208 = scmp.lt.s32.totalorder %s14, 3
      %p209 = pnand %p207, %p208
      %p210 = pneg %p209
      // Predicated region
      $region37: #{tpu_custom_call.1} parent=5 // pred_check
        _
      $region38: #{tpu_custom_call.1} parent=5 // pred_check_branch
        %212 = sbr.rel (%p209) target = $region40
      $region39: #{tpu_custom_call.1} parent=5 // pred_region
        %s213 = ssub.s32 %s14, 1
        %s214 = sadd.s32 %s23, %s24
        %p215 = scmp.lt.s32.totalorder %s214, 1
        %s216 = scalar_select %p215, %s214, 1
        %s217 = smul.addr %s216, 72
        %s218 = smul.addr %s217, 4
        %s219 = scalar_lea.vmem %s0, %s218
        %p220 = pneg %p54
        %p221 = pneg %p51
        %p222 = pneg %p75
        %p223 = pneg %p72
        %p224 = pneg %p96
        %p225 = pneg %p93
        %p226 = pneg %p117
        %p227 = pneg %p114
        %p228 = pneg %p138
        %p229 = pneg %p135
        %p230 = pneg %p166
        %p231 = pneg %p163
        %s232 = sand.u32 %s153, 1
        %s233 = scalar_lea.sflag [#allocation3], %s232
        %s234 = sand.u32 %s153, 1
        %s235 = smul.addr %s234, 64
        %s236 = scalar_lea.vmem [#allocation2], %s235
        %s237 = sadd.s32 %s23, %s24
        %p238 = scmp.lt.s32.totalorder %s237, 1
        %s239 = scalar_select %p238, %s237, 1
        %s240 = smul.addr %s239, 72
        %s241 = smul.addr %s240, 4
        %s242 = scalar_lea.vmem %s0, %s241
        %s243 = sadd.s32 %s23, %s24
        %s244 = smul.u32 8, %s24
        %v246 = vld [vmem:[%s242] sm:$0xf]
        %v247 = vld [vmem:[%s242 + $0x20] sm:$0xf]
        %v248 = vld [vmem:[%s242 + $0x40] sm:$0xf]
        %v249 = vld [vmem:[%s242 + $0x60] sm:$0xf]
        %v250 = vld [vmem:[%s242 + $0x80] sm:$0xf]
        %v251 = vld [vmem:[%s242 + $0xa0] sm:$0xf]
        %v252 = vld [vmem:[%s242 + $0xc0] sm:$0xf]
        %v253 = vld [vmem:[%s242 + $0xe0] sm:$0xf]
        %v254 = vunpack.c.l.bf16 %v246
        %v255 = vunpack.c.l.bf16 %v247
        %v256 = vunpack.c.l.bf16 %v248
        %v257 = vunpack.c.l.bf16 %v249
        %v258 = vunpack.c.l.bf16 %v250
        %v259 = vunpack.c.l.bf16 %v251
        %v260 = vunpack.c.l.bf16 %v252
        %v261 = vunpack.c.l.bf16 %v253
        %v262 = vld [vmem:[%s1] sm:$0x1]
        %v263 = vlaneseq
        %v264 = vshrl.u32 %v263, 7
        %v265 = vsub.s32 0, %v264
        %v266 = vrot.slane %v262, %v265
        %v267 = vmul.f32 %v254, %v266
        %v268 = vmul.f32 %v255, %v266
        %v269 = vmul.f32 %v256, %v266
        %v270 = vmul.f32 %v257, %v266
        %v271 = vmul.f32 %v258, %v266
        %v272 = vmul.f32 %v259, %v266
        %v273 = vmul.f32 %v260, %v266
        %v274 = vmul.f32 %v261, %v266
        %s275 = scalar_lea.vmem %s242, 8
        %v276 = vld [vmem:[%s275] sm:$0xf]
        %v277 = vld [vmem:[%s275 + $0x20] sm:$0xf]
        %v278 = vld [vmem:[%s275 + $0x40] sm:$0xf]
        %v279 = vld [vmem:[%s275 + $0x60] sm:$0xf]
        %v280 = vld [vmem:[%s275 + $0x80] sm:$0xf]
        %v281 = vld [vmem:[%s275 + $0xa0] sm:$0xf]
        %v282 = vld [vmem:[%s275 + $0xc0] sm:$0xf]
        %v283 = vld [vmem:[%s275 + $0xe0] sm:$0xf]
        %v284 = vunpack.c.l.bf16 %v276
        %v285 = vunpack.c.l.bf16 %v277
        %v286 = vunpack.c.l.bf16 %v278
        %v287 = vunpack.c.l.bf16 %v279
        %v288 = vunpack.c.l.bf16 %v280
        %v289 = vunpack.c.l.bf16 %v281
        %v290 = vunpack.c.l.bf16 %v282
        %v291 = vunpack.c.l.bf16 %v283
        %v292 = vld [vmem:[%s1 + $0x1] sm:$0x1]
        %v293 = vlaneseq
        %v294 = vshrl.u32 %v293, 7
        %v295 = vsub.s32 0, %v294
        %v296 = vrot.slane %v292, %v295
        %v297 = vmul.f32 %v284, %v296
        %v298 = vmul.f32 %v285, %v296
        %v299 = vmul.f32 %v286, %v296
        %v300 = vmul.f32 %v287, %v296
        %v301 = vmul.f32 %v288, %v296
        %v302 = vmul.f32 %v289, %v296
        %v303 = vmul.f32 %v290, %v296
        %v304 = vmul.f32 %v291, %v296
        %v305 = vadd.f32 %v267, %v297
        %v306 = vadd.f32 %v268, %v298
        %v307 = vadd.f32 %v269, %v299
        %v308 = vadd.f32 %v270, %v300
        %v309 = vadd.f32 %v271, %v301
        %v310 = vadd.f32 %v272, %v302
        %v311 = vadd.f32 %v273, %v303
        %v312 = vadd.f32 %v274, %v304
        %v313 = vld [vmem:[%s242 + $0x4] sm:$0x1]
        %v314 = vld [vmem:[%s242 + $0x24] sm:$0x1]
        %v315 = vld [vmem:[%s242 + $0x44] sm:$0x1]
        %v316 = vld [vmem:[%s242 + $0x64] sm:$0x1]
        %v317 = vld [vmem:[%s242 + $0x84] sm:$0x1]
        %v318 = vld [vmem:[%s242 + $0xa4] sm:$0x1]
        %v319 = vld [vmem:[%s242 + $0xc4] sm:$0x1]
        %v320 = vld [vmem:[%s242 + $0xe4] sm:$0x1]
        %v321 = vunpack.c.l.bf16 %v313
        %v322 = vunpack.c.l.bf16 %v314
        %v323 = vunpack.c.l.bf16 %v315
        %v324 = vunpack.c.l.bf16 %v316
        %v325 = vunpack.c.l.bf16 %v317
        %v326 = vunpack.c.l.bf16 %v318
        %v327 = vunpack.c.l.bf16 %v319
        %v328 = vunpack.c.l.bf16 %v320
        %v329 = vld [vmem:[%s1 + $0x2] sm:$0x1]
        %v330 = vlaneseq
        %v331 = vshrl.u32 %v330, 7
        %v332 = vsub.s32 0, %v331
        %v333 = vrot.slane %v329, %v332
        %v334 = vmul.f32 %v254, %v333
        %v335 = vmul.f32 %v321, %v333
        %v336 = vmul.f32 %v255, %v333
        %v337 = vmul.f32 %v322, %v333
        %v338 = vmul.f32 %v256, %v333
        %v339 = vmul.f32 %v323, %v333
        %v340 = vmul.f32 %v257, %v333
        %v341 = vmul.f32 %v324, %v333
        %v342 = vmul.f32 %v258, %v333
        %v343 = vmul.f32 %v325, %v333
        %v344 = vmul.f32 %v259, %v333
        %v345 = vmul.f32 %v326, %v333
        %v346 = vmul.f32 %v260, %v333
        %v347 = vmul.f32 %v327, %v333
        %v348 = vmul.f32 %v261, %v333
        %v349 = vmul.f32 %v328, %v333
        %vm366 = vcmask 1046528
        %v367 = vrot.slane %v334, 1
        %v368 = vrot.slane %v335, 1
        %v369 = vsel %vm366, %v367, %v368
        %v370 = vrot.slane %v336, 1
        %v371 = vrot.slane %v337, 1
        %v372 = vsel %vm366, %v370, %v371
        %v373 = vrot.slane %v338, 1
        %v374 = vrot.slane %v339, 1
        %v375 = vsel %vm366, %v373, %v374
        %v376 = vrot.slane %v340, 1
        %v377 = vrot.slane %v341, 1
        %v378 = vsel %vm366, %v376, %v377
        %v379 = vrot.slane %v342, 1
        %v380 = vrot.slane %v343, 1
        %v381 = vsel %vm366, %v379, %v380
        %v382 = vrot.slane %v344, 1
        %v383 = vrot.slane %v345, 1
        %v384 = vsel %vm366, %v382, %v383
        %v385 = vrot.slane %v346, 1
        %v386 = vrot.slane %v347, 1
        %v387 = vsel %vm366, %v385, %v386
        %v388 = vrot.slane %v348, 1
        %v389 = vrot.slane %v349, 1
        %v390 = vsel %vm366, %v388, %v389
        %v399 = vadd.f32 %v305, %v369
        %v400 = vadd.f32 %v306, %v372
        %v401 = vadd.f32 %v307, %v375
        %v402 = vadd.f32 %v308, %v378
        %v403 = vadd.f32 %v309, %v381
        %v404 = vadd.f32 %v310, %v384
        %v405 = vadd.f32 %v311, %v387
        %v406 = vadd.f32 %v312, %v390
        %s407 = scalar_lea.vmem %s242, 16
        %v408 = vld [vmem:[%s407] sm:$0xf]
        %v409 = vld [vmem:[%s407 + $0x20] sm:$0xf]
        %v410 = vld [vmem:[%s407 + $0x40] sm:$0xf]
        %v411 = vld [vmem:[%s407 + $0x60] sm:$0xf]
        %v412 = vld [vmem:[%s407 + $0x80] sm:$0xf]
        %v413 = vld [vmem:[%s407 + $0xa0] sm:$0xf]
        %v414 = vld [vmem:[%s407 + $0xc0] sm:$0xf]
        %v415 = vld [vmem:[%s407 + $0xe0] sm:$0xf]
        %v416 = vunpack.c.l.bf16 %v408
        %v417 = vunpack.c.l.bf16 %v409
        %v418 = vunpack.c.l.bf16 %v410
        %v419 = vunpack.c.l.bf16 %v411
        %v420 = vunpack.c.l.bf16 %v412
        %v421 = vunpack.c.l.bf16 %v413
        %v422 = vunpack.c.l.bf16 %v414
        %v423 = vunpack.c.l.bf16 %v415
        %v424 = vld [vmem:[%s1 + $0x3] sm:$0x1]
        %v425 = vlaneseq
        %v426 = vshrl.u32 %v425, 7
        %v427 = vsub.s32 0, %v426
        %v428 = vrot.slane %v424, %v427
        %v429 = vmul.f32 %v416, %v428
        %v430 = vmul.f32 %v417, %v428
        %v431 = vmul.f32 %v418, %v428
        %v432 = vmul.f32 %v419, %v428
        %v433 = vmul.f32 %v420, %v428
        %v434 = vmul.f32 %v421, %v428
        %v435 = vmul.f32 %v422, %v428
        %v436 = vmul.f32 %v423, %v428
        %v437 = vadd.f32 %v399, %v429
        %v438 = vadd.f32 %v400, %v430
        %v439 = vadd.f32 %v401, %v431
        %v440 = vadd.f32 %v402, %v432
        %v441 = vadd.f32 %v403, %v433
        %v442 = vadd.f32 %v404, %v434
        %v443 = vadd.f32 %v405, %v435
        %v444 = vadd.f32 %v406, %v436
        %s445 = scalar_lea.vmem %s242, 24
        %v446 = vld [vmem:[%s445] sm:$0xf]
        %v447 = vld [vmem:[%s445 + $0x20] sm:$0xf]
        %v448 = vld [vmem:[%s445 + $0x40] sm:$0xf]
        %v449 = vld [vmem:[%s445 + $0x60] sm:$0xf]
        %v450 = vld [vmem:[%s445 + $0x80] sm:$0xf]
        %v451 = vld [vmem:[%s445 + $0xa0] sm:$0xf]
        %v452 = vld [vmem:[%s445 + $0xc0] sm:$0xf]
        %v453 = vld [vmem:[%s445 + $0xe0] sm:$0xf]
        %v454 = vunpack.c.l.bf16 %v446
        %v455 = vunpack.c.l.bf16 %v447
        %v456 = vunpack.c.l.bf16 %v448
        %v457 = vunpack.c.l.bf16 %v449
        %v458 = vunpack.c.l.bf16 %v450
        %v459 = vunpack.c.l.bf16 %v451
        %v460 = vunpack.c.l.bf16 %v452
        %v461 = vunpack.c.l.bf16 %v453
        %v462 = vld [vmem:[%s1 + $0x4] sm:$0x1]
        %v463 = vlaneseq
        %v464 = vshrl.u32 %v463, 7
        %v465 = vsub.s32 0, %v464
        %v466 = vrot.slane %v462, %v465
        %v467 = vmul.f32 %v454, %v466
        %v468 = vmul.f32 %v455, %v466
        %v469 = vmul.f32 %v456, %v466
        %v470 = vmul.f32 %v457, %v466
        %v471 = vmul.f32 %v458, %v466
        %v472 = vmul.f32 %v459, %v466
        %v473 = vmul.f32 %v460, %v466
        %v474 = vmul.f32 %v461, %v466
        %v475 = vadd.f32 %v437, %v467
        %v476 = vadd.f32 %v438, %v468
        %v477 = vadd.f32 %v439, %v469
        %v478 = vadd.f32 %v440, %v470
        %v479 = vadd.f32 %v441, %v471
        %v480 = vadd.f32 %v442, %v472
        %v481 = vadd.f32 %v443, %v473
        %v482 = vadd.f32 %v444, %v474
        %v483 = vld [vmem:[%s407 + $0x4] sm:$0x1]
        %v484 = vld [vmem:[%s407 + $0x24] sm:$0x1]
        %v485 = vld [vmem:[%s407 + $0x44] sm:$0x1]
        %v486 = vld [vmem:[%s407 + $0x64] sm:$0x1]
        %v487 = vld [vmem:[%s407 + $0x84] sm:$0x1]
        %v488 = vld [vmem:[%s407 + $0xa4] sm:$0x1]
        %v489 = vld [vmem:[%s407 + $0xc4] sm:$0x1]
        %v490 = vld [vmem:[%s407 + $0xe4] sm:$0x1]
        %v491 = vunpack.c.l.bf16 %v483
        %v492 = vunpack.c.l.bf16 %v484
        %v493 = vunpack.c.l.bf16 %v485
        %v494 = vunpack.c.l.bf16 %v486
        %v495 = vunpack.c.l.bf16 %v487
        %v496 = vunpack.c.l.bf16 %v488
        %v497 = vunpack.c.l.bf16 %v489
        %v498 = vunpack.c.l.bf16 %v490
        %v499 = vld [vmem:[%s1 + $0x5] sm:$0x1]
        %v500 = vlaneseq
        %v501 = vshrl.u32 %v500, 7
        %v502 = vsub.s32 0, %v501
        %v503 = vrot.slane %v499, %v502
        %v504 = vmul.f32 %v416, %v503
        %v505 = vmul.f32 %v491, %v503
        %v506 = vmul.f32 %v417, %v503
        %v507 = vmul.f32 %v492, %v503
        %v508 = vmul.f32 %v418, %v503
        %v509 = vmul.f32 %v493, %v503
        %v510 = vmul.f32 %v419, %v503
        %v511 = vmul.f32 %v494, %v503
        %v512 = vmul.f32 %v420, %v503
        %v513 = vmul.f32 %v495, %v503
        %v514 = vmul.f32 %v421, %v503
        %v515 = vmul.f32 %v496, %v503
        %v516 = vmul.f32 %v422, %v503
        %v517 = vmul.f32 %v497, %v503
        %v518 = vmul.f32 %v423, %v503
        %v519 = vmul.f32 %v498, %v503
        %v536 = vrot.slane %v504, 1
        %v537 = vrot.slane %v505, 1
        %v538 = vsel %vm366, %v536, %v537
        %v539 = vrot.slane %v506, 1
        %v540 = vrot.slane %v507, 1
        %v541 = vsel %vm366, %v539, %v540
        %v542 = vrot.slane %v508, 1
        %v543 = vrot.slane %v509, 1
        %v544 = vsel %vm366, %v542, %v543
        %v545 = vrot.slane %v510, 1
        %v546 = vrot.slane %v511, 1
        %v547 = vsel %vm366, %v545, %v546
        %v548 = vrot.slane %v512, 1
        %v549 = vrot.slane %v513, 1
        %v550 = vsel %vm366, %v548, %v549
        %v551 = vrot.slane %v514, 1
        %v552 = vrot.slane %v515, 1
        %v553 = vsel %vm366, %v551, %v552
        %v554 = vrot.slane %v516, 1
        %v555 = vrot.slane %v517, 1
        %v556 = vsel %vm366, %v554, %v555
        %v557 = vrot.slane %v518, 1
        %v558 = vrot.slane %v519, 1
        %v559 = vsel %vm366, %v557, %v558
        %v568 = vadd.f32 %v475, %v538
        %v569 = vadd.f32 %v476, %v541
        %v570 = vadd.f32 %v477, %v544
        %v571 = vadd.f32 %v478, %v547
        %v572 = vadd.f32 %v479, %v550
        %v573 = vadd.f32 %v480, %v553
        %v574 = vadd.f32 %v481, %v556
        %v575 = vadd.f32 %v482, %v559
        %s576 = scalar_lea.vmem %s242, 32
        %v577 = vld [vmem:[%s576] sm:$0xf]
        %v578 = vld [vmem:[%s576 + $0x20] sm:$0xf]
        %v579 = vld [vmem:[%s576 + $0x40] sm:$0xf]
        %v580 = vld [vmem:[%s576 + $0x60] sm:$0xf]
        %v581 = vld [vmem:[%s576 + $0x80] sm:$0xf]
        %v582 = vld [vmem:[%s576 + $0xa0] sm:$0xf]
        %v583 = vld [vmem:[%s576 + $0xc0] sm:$0xf]
        %v584 = vld [vmem:[%s576 + $0xe0] sm:$0xf]
        %v585 = vunpack.c.l.bf16 %v577
        %v586 = vunpack.c.l.bf16 %v578
        %v587 = vunpack.c.l.bf16 %v579
        %v588 = vunpack.c.l.bf16 %v580
        %v589 = vunpack.c.l.bf16 %v581
        %v590 = vunpack.c.l.bf16 %v582
        %v591 = vunpack.c.l.bf16 %v583
        %v592 = vunpack.c.l.bf16 %v584
        %v593 = vld [vmem:[%s1 + $0x6] sm:$0x1]
        %v594 = vlaneseq
        %v595 = vshrl.u32 %v594, 7
        %v596 = vsub.s32 0, %v595
        %v597 = vrot.slane %v593, %v596
        %v598 = vmul.f32 %v585, %v597
        %v599 = vmul.f32 %v586, %v597
        %v600 = vmul.f32 %v587, %v597
        %v601 = vmul.f32 %v588, %v597
        %v602 = vmul.f32 %v589, %v597
        %v603 = vmul.f32 %v590, %v597
        %v604 = vmul.f32 %v591, %v597
        %v605 = vmul.f32 %v592, %v597
        %v606 = vadd.f32 %v568, %v598
        %v607 = vadd.f32 %v569, %v599
        %v608 = vadd.f32 %v570, %v600
        %v609 = vadd.f32 %v571, %v601
        %v610 = vadd.f32 %v572, %v602
        %v611 = vadd.f32 %v573, %v603
        %v612 = vadd.f32 %v574, %v604
        %v613 = vadd.f32 %v575, %v605
        %s614 = scalar_lea.vmem %s242, 40
        %v615 = vld [vmem:[%s614] sm:$0xf]
        %v616 = vld [vmem:[%s614 + $0x20] sm:$0xf]
        %v617 = vld [vmem:[%s614 + $0x40] sm:$0xf]
        %v618 = vld [vmem:[%s614 + $0x60] sm:$0xf]
        %v619 = vld [vmem:[%s614 + $0x80] sm:$0xf]
        %v620 = vld [vmem:[%s614 + $0xa0] sm:$0xf]
        %v621 = vld [vmem:[%s614 + $0xc0] sm:$0xf]
        %v622 = vld [vmem:[%s614 + $0xe0] sm:$0xf]
        %v623 = vunpack.c.l.bf16 %v615
        %v624 = vunpack.c.l.bf16 %v616
        %v625 = vunpack.c.l.bf16 %v617
        %v626 = vunpack.c.l.bf16 %v618
        %v627 = vunpack.c.l.bf16 %v619
        %v628 = vunpack.c.l.bf16 %v620
        %v629 = vunpack.c.l.bf16 %v621
        %v630 = vunpack.c.l.bf16 %v622
        %v631 = vld [vmem:[%s1 + $0x7] sm:$0x1]
        %v632 = vlaneseq
        %v633 = vshrl.u32 %v632, 7
        %v634 = vsub.s32 0, %v633
        %v635 = vrot.slane %v631, %v634
        %v636 = vmul.f32 %v623, %v635
        %v637 = vmul.f32 %v624, %v635
        %v638 = vmul.f32 %v625, %v635
        %v639 = vmul.f32 %v626, %v635
        %v640 = vmul.f32 %v627, %v635
        %v641 = vmul.f32 %v628, %v635
        %v642 = vmul.f32 %v629, %v635
        %v643 = vmul.f32 %v630, %v635
        %v644 = vadd.f32 %v606, %v636
        %v645 = vadd.f32 %v607, %v637
        %v646 = vadd.f32 %v608, %v638
        %v647 = vadd.f32 %v609, %v639
        %v648 = vadd.f32 %v610, %v640
        %v649 = vadd.f32 %v611, %v641
        %v650 = vadd.f32 %v612, %v642
        %v651 = vadd.f32 %v613, %v643
        %v652 = vld [vmem:[%s576 + $0x4] sm:$0x1]
        %v653 = vld [vmem:[%s576 + $0x24] sm:$0x1]
        %v654 = vld [vmem:[%s576 + $0x44] sm:$0x1]
        %v655 = vld [vmem:[%s576 + $0x64] sm:$0x1]
        %v656 = vld [vmem:[%s576 + $0x84] sm:$0x1]
        %v657 = vld [vmem:[%s576 + $0xa4] sm:$0x1]
        %v658 = vld [vmem:[%s576 + $0xc4] sm:$0x1]
        %v659 = vld [vmem:[%s576 + $0xe4] sm:$0x1]
        %v660 = vunpack.c.l.bf16 %v652
        %v661 = vunpack.c.l.bf16 %v653
        %v662 = vunpack.c.l.bf16 %v654
        %v663 = vunpack.c.l.bf16 %v655
        %v664 = vunpack.c.l.bf16 %v656
        %v665 = vunpack.c.l.bf16 %v657
        %v666 = vunpack.c.l.bf16 %v658
        %v667 = vunpack.c.l.bf16 %v659
        %v668 = vld [vmem:[%s1 + $0x8] sm:$0x1]
        %v669 = vlaneseq
        %v670 = vshrl.u32 %v669, 7
        %v671 = vsub.s32 0, %v670
        %v672 = vrot.slane %v668, %v671
        %v673 = vmul.f32 %v585, %v672
        %v674 = vmul.f32 %v660, %v672
        %v675 = vmul.f32 %v586, %v672
        %v676 = vmul.f32 %v661, %v672
        %v677 = vmul.f32 %v587, %v672
        %v678 = vmul.f32 %v662, %v672
        %v679 = vmul.f32 %v588, %v672
        %v680 = vmul.f32 %v663, %v672
        %v681 = vmul.f32 %v589, %v672
        %v682 = vmul.f32 %v664, %v672
        %v683 = vmul.f32 %v590, %v672
        %v684 = vmul.f32 %v665, %v672
        %v685 = vmul.f32 %v591, %v672
        %v686 = vmul.f32 %v666, %v672
        %v687 = vmul.f32 %v592, %v672
        %v688 = vmul.f32 %v667, %v672
        %v705 = vrot.slane %v673, 1
        %v706 = vrot.slane %v674, 1
        %v707 = vsel %vm366, %v705, %v706
        %v708 = vrot.slane %v675, 1
        %v709 = vrot.slane %v676, 1
        %v710 = vsel %vm366, %v708, %v709
        %v711 = vrot.slane %v677, 1
        %v712 = vrot.slane %v678, 1
        %v713 = vsel %vm366, %v711, %v712
        %v714 = vrot.slane %v679, 1
        %v715 = vrot.slane %v680, 1
        %v716 = vsel %vm366, %v714, %v715
        %v717 = vrot.slane %v681, 1
        %v718 = vrot.slane %v682, 1
        %v719 = vsel %vm366, %v717, %v718
        %v720 = vrot.slane %v683, 1
        %v721 = vrot.slane %v684, 1
        %v722 = vsel %vm366, %v720, %v721
        %v723 = vrot.slane %v685, 1
        %v724 = vrot.slane %v686, 1
        %v725 = vsel %vm366, %v723, %v724
        %v726 = vrot.slane %v687, 1
        %v727 = vrot.slane %v688, 1
        %v728 = vsel %vm366, %v726, %v727
        %v737 = vadd.f32 %v644, %v707
        %v738 = vadd.f32 %v645, %v710
        %v739 = vadd.f32 %v646, %v713
        %v740 = vadd.f32 %v647, %v716
        %v741 = vadd.f32 %v648, %v719
        %v742 = vadd.f32 %v649, %v722
        %v743 = vadd.f32 %v650, %v725
        %v744 = vadd.f32 %v651, %v728
        %v745 = vld [vmem:[%s2] sm:$0x1]
        %v747 = vlaneseq
        %v748 = vshrl.u32 %v747, 7
        %v749 = vsub.s32 0, %v748
        %v750 = vrot.slane %v745, %v749
        %v752 = vadd.f32 %v737, %v750
        %v753 = vadd.f32 %v738, %v750
        %v754 = vadd.f32 %v739, %v750
        %v755 = vadd.f32 %v740, %v750
        %v756 = vadd.f32 %v741, %v750
        %v757 = vadd.f32 %v742, %v750
        %v758 = vadd.f32 %v743, %v750
        %v759 = vadd.f32 %v744, %v750
        %v760 = vmax.f32 %v752, 0.0
        %v761 = vmax.f32 %v753, 0.0
        %v762 = vmax.f32 %v754, 0.0
        %v763 = vmax.f32 %v755, 0.0
        %v764 = vmax.f32 %v756, 0.0
        %v765 = vmax.f32 %v757, 0.0
        %v766 = vmax.f32 %v758, 0.0
        %v767 = vmax.f32 %v759, 0.0
        %v768 = vpack.c.bf16 %v760, %v760
        %v769 = vpack.c.bf16 %v761, %v761
        %v770 = vpack.c.bf16 %v762, %v762
        %v771 = vpack.c.bf16 %v763, %v763
        %v772 = vpack.c.bf16 %v764, %v764
        %v773 = vpack.c.bf16 %v765, %v765
        %v774 = vpack.c.bf16 %v766, %v766
        %v775 = vpack.c.bf16 %v767, %v767
        %v776 = vld [vmem:[%s3] sm:$0x3]
        %v777 = vld [vmem:[%s4] sm:$0x1]
        %v779 = vlaneseq
        %v780 = vshrl.u32 %v779, 7
        %v781 = vsub.s32 0, %v780
        %v782 = vrot.slane %v777, %v781
        %v792 = vunpack.c.l.b16 %v768
        %v793 = vunpack.c.l.b16 %v769
        %v794 = vunpack.c.l.b16 %v770
        %v795 = vunpack.c.l.b16 %v771
        %v796 = vunpack.c.l.b16 %v772
        %v797 = vunpack.c.l.b16 %v773
        %v798 = vunpack.c.l.b16 %v774
        %v799 = vunpack.c.l.b16 %v775
        %v800 = vpack.c.b16 %v793, %v792
        %v801 = vpack.c.b16 %v795, %v794
        %v802 = vpack.c.b16 %v797, %v796
        %v803 = vpack.c.b16 %v799, %v798
        %vm804 = vcmask 31744
        %v806 = vsel %vm804, %v800, 0
        %v809 = vsel %vm804, %v801, 0
        %v812 = vsel %vm804, %v802, 0
        %v815 = vsel %vm804, %v803, 0
        %vm817 = vcmask 1041408
        %v819 = vsel %vm817, %v776, 0
        %821 = vmatprep.subr.bf16.mxu0 0
        %822 = vmatpush1.bf16.msra.mxu0 0
        %823 = vmatprep.subr.bf16.mxu0 0
        %824 = vmatpush1.bf16.msra.mxu0 0
        %825 = vmatprep.subr.bf16.mxu0 0
        %826 = vmatpush1.bf16.msra.mxu0 0
        %827 = vmatprep.subr.bf16.mxu0 0
        %828 = vmatpush1.bf16.msra.mxu0 0
        %829 = vmatprep.subr.bf16.mxu0 0
        %830 = vmatpush1.bf16.msra.mxu0 0
        %831 = vmatprep.subr.bf16.mxu0 0
        %832 = vmatpush1.bf16.msra.mxu0 0
        %833 = vmatprep.subr.bf16.mxu0 0
        %834 = vmatpush1.bf16.msra.mxu0 0
        %835 = vmatprep.subr.bf16.mxu0 0
        %836 = vmatpush1.bf16.msra.mxu0 %v819
        %837 = vmatprep.subr.bf16.mxu0 0
        %838 = vmatpush2.bf16.msra.mxu0 0
        %839 = vmatprep.subr.bf16.mxu0 0
        %840 = vmatpush2.bf16.msra.mxu0 0
        %841 = vmatprep.subr.bf16.mxu0 0
        %842 = vmatpush2.bf16.msra.mxu0 0
        %843 = vmatprep.subr.bf16.mxu0 0
        %844 = vmatpush2.bf16.msra.mxu0 0
        %845 = vmatprep.subr.bf16.mxu0 0
        %846 = vmatpush2.bf16.msra.mxu0 0
        %847 = vmatprep.subr.bf16.mxu0 0
        %848 = vmatpush2.bf16.msra.mxu0 0
        %849 = vmatprep.subr.bf16.mxu0 0
        %850 = vmatpush2.bf16.msra.mxu0 0
        %851 = vmatprep.subr.bf16.mxu0 0
        %852 = vmatpush2.bf16.msra.mxu0 0
        %853 = vmatprep.mubr.bf16.mxu0 0
        %854 = vmatmul.mubr.bf16.gmra.mxu0 %v806
        %v855 = vpop.f32.mrf.mxu0
        %v856 = vadd.f32 %v782, %v855
        %v857 = vpop.f32.mrf.mxu0
        %v858 = vpop.f32.mrf.mxu0
        %v859 = vadd.f32 %v782, %v858
        %v860 = vpop.f32.mrf.mxu0
        %861 = vmatprep.mubr.bf16.mxu0 0
        %862 = vmatmul.mubr.bf16.gmra.mxu0 %v809
        %v863 = vpop.f32.mrf.mxu0
        %v864 = vadd.f32 %v782, %v863
        %v865 = vpop.f32.mrf.mxu0
        %v866 = vpop.f32.mrf.mxu0
        %v867 = vadd.f32 %v782, %v866
        %v868 = vpop.f32.mrf.mxu0
        %869 = vmatprep.mubr.bf16.mxu0 0
        %870 = vmatmul.mubr.bf16.gmra.mxu0 %v812
        %v871 = vpop.f32.mrf.mxu0
        %v872 = vadd.f32 %v782, %v871
        %v873 = vpop.f32.mrf.mxu0
        %v874 = vpop.f32.mrf.mxu0
        %v875 = vadd.f32 %v782, %v874
        %v876 = vpop.f32.mrf.mxu0
        %877 = vmatprep.mubr.bf16.mxu0 0
        %878 = vmatmul.mubr.bf16.gmra.mxu0 %v815
        %v879 = vpop.f32.mrf.mxu0
        %v880 = vadd.f32 %v782, %v879
        %v881 = vpop.f32.mrf.mxu0
        %v882 = vpop.f32.mrf.mxu0
        %v883 = vadd.f32 %v782, %v882
        %v884 = vpop.f32.mrf.mxu0
        %885 = vdwg.mxu0
        %v886 = vmax.f32 %v856, 0.0
        %v887 = vmax.f32 %v859, 0.0
        %v888 = vmax.f32 %v864, 0.0
        %v889 = vmax.f32 %v867, 0.0
        %v890 = vmax.f32 %v872, 0.0
        %v891 = vmax.f32 %v875, 0.0
        %v892 = vmax.f32 %v880, 0.0
        %v893 = vmax.f32 %v883, 0.0
        %894 = vst [vmem:[%s236] sm:$0xff] %v886
        %895 = vst [vmem:[%s236 + $0x8] sm:$0xff] %v887
        %896 = vst [vmem:[%s236 + $0x10] sm:$0xff] %v888
        %897 = vst [vmem:[%s236 + $0x18] sm:$0xff] %v889
        %898 = vst [vmem:[%s236 + $0x20] sm:$0xff] %v890
        %899 = vst [vmem:[%s236 + $0x28] sm:$0xff] %v891
        %900 = vst [vmem:[%s236 + $0x30] sm:$0xff] %v892
        %901 = vst [vmem:[%s236 + $0x38] sm:$0xff] %v893
        %s902 = sand.u32 %s153, 1
        %s903 = scalar_lea.sflag [#allocation3], %s902
        %s904 = sand.u32 %s153, 1
        %s905 = smul.addr %s904, 64
        %s906 = scalar_lea.vmem [#allocation2], %s905
        // Predicated region
        $region41: #{tpu_custom_call.1} parent=39 // pred_check
          %p907 = pneg %p163
        $region42: #{tpu_custom_call.1} parent=39 // pred_check_branch
          %909 = sbr.rel (%p907) target = $region44
        $region43: #{tpu_custom_call.1} parent=39 // pred_region
          %s910 = smul.u32 8, %s24
          %s912 = ssub.s32 1024, 1024
          %913 = vsyncadd %s903, %s912
          %s914 = smul.addr %s23, 8
          %s915 = sadd.s32 %s910, %s914
          %s916 = smul.addr %s915, 128
          %s917 = scalar_lea.hbm %s5, %s916
          %s918 = sshll.u32 %s906, 4
          %s919 = int_to_ptr.vmem [resolvable:$true] %s918
          %924 = dma.vmem_to_hbm [thread:$0]  %s919, 1024, %s917, %s903, 128, 128, 8
        $region44: #{tpu_custom_call.1} parent=39 // pred_fallthru
          _
      $region40: #{tpu_custom_call.1} parent=5 // pred_fallthru
        _
      %p925 = scmp.le.s32.totalorder 2, %s14
      // Predicated region
      $region45: #{tpu_custom_call.1} parent=5 // pred_check
        %p926 = pneg %p925
      $region46: #{tpu_custom_call.1} parent=5 // pred_check_branch
        %928 = sbr.rel (%p926) target = $region48
      $region47: #{tpu_custom_call.1} parent=5 // pred_region
        %s929 = ssub.s32 %s14, 2
        // Predicated region
        $region49: #{tpu_custom_call.1} parent=47 // pred_check
          %p930 = pneg %p169
        $region50: #{tpu_custom_call.1} parent=47 // pred_check_branch
          %932 = sbr.rel (%p930) target = $region52
        $region51: #{tpu_custom_call.1} parent=47 // pred_region
          %s933 = sand.u32 %s154, 1
          %s934 = scalar_lea.sflag [#allocation3], %s933
          %s935 = sand.u32 %s154, 1
          %s936 = smul.addr %s935, 64
          %s937 = scalar_lea.vmem [#allocation2], %s936
          %938 = dma.done %s934, 1024
        $region52: #{tpu_custom_call.1} parent=47 // pred_fallthru
          _
      $region48: #{tpu_custom_call.1} parent=5 // pred_fallthru
        _
    $region6: #{tpu_custom_call.1} parent=1 // loop_footer
      %s18 = sadd.s32 1, %s14
    $region7: #{tpu_custom_call.1} parent=1 // loop_footer_branch
      %13 = sbr.rel target = $region3
    $region8: #{tpu_custom_call.1} parent=1 // loop_exit
      _
    %939 = vsyncpa [#allocation3], 1
    %s940 = scalar_lea.sflag [#allocation3], 1
    %941 = vsyncpa %s940, 1

</llo_original>
